<compile_context>
chip_gen: v7x
topology: tpu7x:2x2x1
jax: 0.10.0
libtpu: 0.0.40
codegen_flags: <defaults>
</compile_context>

<pallas_src>
import numpy as np
import jax
import jax.numpy as jnp
from jax.experimental import pallas as pl
from jax.experimental.pallas import tpu as pltpu

_LOG_2PI = float(np.log(2.0 * np.pi))


def _gaussian_log_loss(mu, log_var, target):
    """Per-element Gaussian negative log-likelihood (mean, log-variance)."""
    d = target - mu
    return 0.5 * (d * d * jnp.exp(-log_var) + log_var + _LOG_2PI)


def _make_kernel(tm, lane, num_k, total, need_valid, with_mask):
    if with_mask:
        def kernel(mu_ref, lv_ref, t_ref, m_ref, loss_ref, cnt_ref, acc_ref, macc_ref):
            k = pl.program_id(1)

            @pl.when(k == 0)
            def _init():
                acc_ref[...] = jnp.zeros_like(acc_ref)
                macc_ref[...] = jnp.zeros_like(macc_ref)

            mu = mu_ref[...].astype(jnp.float32)
            lv = lv_ref[...].astype(jnp.float32)
            t = t_ref[...].astype(jnp.float32)
            m = m_ref[...].astype(jnp.float32)

            nll = _gaussian_log_loss(mu, lv, t)
            # mask is zero on any padded tail, so padded elements contribute 0
            acc_ref[...] += nll * m
            macc_ref[...] += m

            @pl.when(k == num_k - 1)
            def _fin():
                loss_ref[...] = jnp.full((8, 128), jnp.sum(acc_ref[...]), jnp.float32)
                cnt_ref[...] = jnp.full((8, 128), jnp.sum(macc_ref[...]), jnp.float32)

        return kernel

    def kernel(mu_ref, lv_ref, t_ref, loss_ref, acc_ref):
        p = pl.program_id(0)
        k = pl.program_id(1)

        @pl.when(k == 0)
        def _init():
            acc_ref[...] = jnp.zeros_like(acc_ref)

        mu = mu_ref[...].astype(jnp.float32)
        lv = lv_ref[...].astype(jnp.float32)
        t = t_ref[...].astype(jnp.float32)

        nll = _gaussian_log_loss(mu, lv, t)

        if need_valid:
            # exclude the zero-padded tail exactly (Gaussian NLL of zeros is nonzero)
            row0 = (p * num_k + k) * tm
            ridx = jax.lax.broadcasted_iota(jnp.int32, (tm, lane), 0) + row0
            lidx = jax.lax.broadcasted_iota(jnp.int32, (tm, lane), 1)
            gidx = ridx * lane + lidx
            nll = jnp.where(gidx < total, nll, 0.0)

        acc_ref[...] += nll

        @pl.when(k == num_k - 1)
        def _fin():
            loss_ref[...] = jnp.full((8, 128), jnp.sum(acc_ref[...]), jnp.float32)

    return kernel


def distribution_log_loss(inputs, target, mask=None, *, lane=512, row_tile=512):
    """Matches DistributionLogLoss.forward for a Gaussian (mean, log_var) distribution."""
    mean, log_var = inputs
    total = int(np.prod(target.shape))

    mu = mean.reshape(-1)
    lv = log_var.reshape(-1)
    t = target.reshape(-1)
    streams = [mu, lv, t]
    with_mask = mask is not None
    if with_mask:
        streams.append(mask.astype(jnp.float32).reshape(-1))

    # lane-dense tiling
    rows = -(-total // lane)
    tm = min(row_tile, -(-rows // 8) * 8)        # multiple of 8, <= row_tile
    nrb = -(-rows // tm)                         # number of row blocks
    ncores = 2 if (nrb % 2 == 0 and nrb >= 2) else 1
    num_k = nrb // ncores
    rows_pad = nrb * tm
    padded = rows_pad * lane
    need_pad = padded != total

    def to2d(x):
        if need_pad:
            x = jnp.pad(x, (0, padded - total))
        return x.reshape(rows_pad, lane)

    streams2d = [to2d(s) for s in streams]

    in_spec = pl.BlockSpec((tm, lane), lambda p, k: (p * num_k + k, 0))
    out_spec = pl.BlockSpec((8, 128), lambda p, k: (p, 0))
    out_struct = jax.ShapeDtypeStruct((ncores * 8, 128), jnp.float32)

    kernel = _make_kernel(tm, lane, num_k, total, need_pad, with_mask)

    scratch = [pltpu.VMEM((tm, lane), jnp.float32)]
    if with_mask:
        scratch = scratch + [pltpu.VMEM((tm, lane), jnp.float32)]
        out_shape = (out_struct, out_struct)
        out_specs = (out_spec, out_spec)
    else:
        out_shape = out_struct
        out_specs = out_spec

    result = pl.pallas_call(
        kernel,
        out_shape=out_shape,
        grid_spec=pltpu.PrefetchScalarGridSpec(
            num_scalar_prefetch=0,
            grid=(ncores, num_k),
            in_specs=[in_spec] * len(streams2d),
            out_specs=out_specs,
            scratch_shapes=scratch,
        ),
        compiler_params=pltpu.CompilerParams(
            dimension_semantics=("parallel", "arbitrary"),
            vmem_limit_bytes=32 * 1024 * 1024,
        ),
    )(*streams2d)

    if with_mask:
        loss_out, cnt_out = result
        loss_sum = jnp.sum(loss_out[::8, 0])     # one partial per core
        cnt_sum = jnp.sum(cnt_out[::8, 0])
        return loss_sum / cnt_sum
    loss_sum = jnp.sum(result[::8, 0])
    return loss_sum / jnp.float32(total)


def _reference(inputs, target, mask=None):
    mean, log_var = inputs
    nll = _gaussian_log_loss(mean.astype(jnp.float32),
                             log_var.astype(jnp.float32),
                             target.astype(jnp.float32))
    if mask is not None:
        m = mask.astype(jnp.float32)
        nll = nll * m
        count = jnp.sum(m)
    else:
        count = jnp.float32(float(np.prod(target.shape)))
    return jnp.sum(nll) / count


if __name__ == "__main__":
    key = jax.random.PRNGKey(0)
    k1, k2, k3, k4 = jax.random.split(key, 4)

    # small NCHW shapes consistent with a depth-prediction loss
    shape = (2, 4, 16, 16)
    mean = jax.random.normal(k1, shape, dtype=jnp.float32)
    log_var = 0.5 * jax.random.normal(k2, shape, dtype=jnp.float32)
    target = jax.random.normal(k3, shape, dtype=jnp.float32)
    mask = (jax.random.uniform(k4, shape) > 0.5).astype(jnp.float32)

    # no-mask path
    out = jax.block_until_ready(distribution_log_loss((mean, log_var), target))
    ref = _reference((mean, log_var), target)
    assert np.allclose(np.asarray(out), np.asarray(ref), rtol=1e-5, atol=1e-5), (out, ref)

    # masked path
    out_m = jax.block_until_ready(distribution_log_loss((mean, log_var), target, mask))
    ref_m = _reference((mean, log_var), target, mask)
    assert np.allclose(np.asarray(out_m), np.asarray(ref_m), rtol=1e-5, atol=1e-5), (out_m, ref_m)

    # larger shape: exercises the no-pad, two-core-partials path
    shape2 = (2, 4, 256, 256)
    j1, j2, j3, j4 = jax.random.split(jax.random.PRNGKey(1), 4)
    mean2 = jax.random.normal(j1, shape2, dtype=jnp.float32)
    log_var2 = 0.5 * jax.random.normal(j2, shape2, dtype=jnp.float32)
    target2 = jax.random.normal(j3, shape2, dtype=jnp.float32)
    mask2 = (jax.random.uniform(j4, shape2) > 0.5).astype(jnp.float32)

    out2 = jax.block_until_ready(distribution_log_loss((mean2, log_var2), target2))
    ref2 = _reference((mean2, log_var2), target2)
    assert np.allclose(np.asarray(out2), np.asarray(ref2), rtol=1e-4, atol=1e-5), (out2, ref2)

    out2m = jax.block_until_ready(distribution_log_loss((mean2, log_var2), target2, mask2))
    ref2m = _reference((mean2, log_var2), target2, mask2)
    assert np.allclose(np.asarray(out2m), np.asarray(ref2m), rtol=1e-4, atol=1e-5), (out2m, ref2m)

    print("KERNEL_OK")
</pallas_src>

<mosaic_0001>
module attributes {stable_mosaic.version = 11 : i64} {
  func.func @kernel(%arg0: i32, %arg1: i32, %arg2: memref<8x512xf32, #tpu.memory_space<vmem>>, %arg3: memref<8x512xf32, #tpu.memory_space<vmem>>, %arg4: memref<8x512xf32, #tpu.memory_space<vmem>>, %arg5: memref<8x128xf32, #tpu.memory_space<vmem>>, %arg6: memref<8x512xf32, #tpu.memory_space<vmem>>) attributes {dimension_semantics = [#tpu.dimension_semantics<parallel>, #tpu.dimension_semantics<arbitrary>], iteration_bounds = array<i64: 1, 1>, scalar_prefetch = 0 : i64, scratch_operands = 1 : i64, tpu.core_type = #tpu.core_type<tc>, window_params = [{transform_indices = @transform_0, window_bounds = array<i64: 8, 512>}, {transform_indices = @transform_1, window_bounds = array<i64: 8, 512>}, {transform_indices = @transform_2, window_bounds = array<i64: 8, 512>}, {transform_indices = @transform_3, window_bounds = array<i64: 8, 128>}]} {
    %c0_i32 = arith.constant 0 : i32
    %0 = arith.cmpi eq, %arg1, %c0_i32 : i32
    %1 = arith.extui %0 : i1 to i32
    %c0_i32_0 = arith.constant 0 : i32
    %2 = arith.cmpi ne, %1, %c0_i32_0 : i32
    scf.if %2 {
      %cst_15 = arith.constant 0.000000e+00 : f32
      %37 = vector.broadcast %cst_15 : f32 to vector<8x512xf32>
      %c0_16 = arith.constant 0 : index
      %c0_17 = arith.constant 0 : index
      %38 = vector.load %arg6[%c0_16, %c0_17] : memref<8x512xf32, #tpu.memory_space<vmem>>, vector<8x512xf32>
      tpu.vector_store %arg6[%c0_16, %c0_17], %37 {strides = array<i32>} : memref<8x512xf32, #tpu.memory_space<vmem>>, vector<8x512xf32>,
    } else {
    }
    %c0 = arith.constant 0 : index
    %c0_1 = arith.constant 0 : index
    %3 = vector.load %arg2[%c0, %c0_1] : memref<8x512xf32, #tpu.memory_space<vmem>>, vector<8x512xf32>
    %c0_2 = arith.constant 0 : index
    %c0_3 = arith.constant 0 : index
    %4 = vector.load %arg3[%c0_2, %c0_3] : memref<8x512xf32, #tpu.memory_space<vmem>>, vector<8x512xf32>
    %c0_4 = arith.constant 0 : index
    %c0_5 = arith.constant 0 : index
    %5 = vector.load %arg4[%c0_4, %c0_5] : memref<8x512xf32, #tpu.memory_space<vmem>>, vector<8x512xf32>
    %6 = arith.subf %5, %3 : vector<8x512xf32>
    %7 = arith.mulf %6, %6 : vector<8x512xf32>
    %cst = arith.constant 0.000000e+00 : f32
    %8 = vector.broadcast %cst : f32 to vector<8x512xf32>
    %9 = arith.subf %8, %4 : vector<8x512xf32>
    %10 = math.exp %9 : vector<8x512xf32>
    %11 = arith.mulf %7, %10 : vector<8x512xf32>
    %12 = arith.addf %11, %4 : vector<8x512xf32>
    %cst_6 = arith.constant 1.83787704 : f32
    %13 = vector.broadcast %cst_6 : f32 to vector<8x512xf32>
    %14 = arith.addf %12, %13 : vector<8x512xf32>
    %cst_7 = arith.constant 5.000000e-01 : f32
    %15 = vector.broadcast %cst_7 : f32 to vector<8x512xf32>
    %16 = arith.mulf %15, %14 : vector<8x512xf32>
    %c1_i32 = arith.constant 1 : i32
    %17 = arith.muli %arg0, %c1_i32 : i32
    %18 = arith.addi %17, %arg1 : i32
    %c8_i32 = arith.constant 8 : i32
    %19 = arith.muli %18, %c8_i32 : i32
    %20 = tpu.iota {dimensions = array<i32: 0>} : vector<8x512xi32>
    %21 = vector.broadcast %19 : i32 to vector<8x512xi32>
    %22 = arith.addi %20, %21 : vector<8x512xi32>
    %23 = tpu.iota {dimensions = array<i32: 1>} : vector<8x512xi32>
    %c512_i32 = arith.constant 512 : i32
    %24 = vector.broadcast %c512_i32 : i32 to vector<8x512xi32>
    %25 = arith.muli %22, %24 : vector<8x512xi32>
    %26 = arith.addi %25, %23 : vector<8x512xi32>
    %c2048_i32 = arith.constant 2048 : i32
    %27 = vector.broadcast %c2048_i32 : i32 to vector<8x512xi32>
    %28 = arith.cmpi slt, %26, %27 : vector<8x512xi32>
    %cst_8 = arith.constant 0.000000e+00 : f32
    %29 = vector.broadcast %cst_8 : f32 to vector<8x512xf32>
    %30 = arith.select %28, %16, %29 : vector<8x512xi1>, vector<8x512xf32>
    %c0_9 = arith.constant 0 : index
    %c0_10 = arith.constant 0 : index
    %31 = vector.load %arg6[%c0_9, %c0_10] : memref<8x512xf32, #tpu.memory_space<vmem>>, vector<8x512xf32>
    %32 = arith.addf %31, %30 : vector<8x512xf32>
    %c0_11 = arith.constant 0 : index
    %c0_12 = arith.constant 0 : index
    %33 = vector.load %arg6[%c0_11, %c0_12] : memref<8x512xf32, #tpu.memory_space<vmem>>, vector<8x512xf32>
    tpu.vector_store %arg6[%c0_11, %c0_12], %32 {strides = array<i32>} : memref<8x512xf32, #tpu.memory_space<vmem>>, vector<8x512xf32>,
    %c0_i32_13 = arith.constant 0 : i32
    %34 = arith.cmpi eq, %arg1, %c0_i32_13 : i32
    %35 = arith.extui %34 : i1 to i32
    %c0_i32_14 = arith.constant 0 : i32
    %36 = arith.cmpi ne, %35, %c0_i32_14 : i32
    scf.if %36 {
      %c0_15 = arith.constant 0 : index
      %c0_16 = arith.constant 0 : index
      %37 = vector.load %arg6[%c0_15, %c0_16] : memref<8x512xf32, #tpu.memory_space<vmem>>, vector<8x512xf32>
      %38 = vector.shape_cast %37 : vector<8x512xf32> to vector<1x8x512xf32>
      %cst_17 = arith.constant dense<0.000000e+00> : vector<1xf32>
      %39 = vector.multi_reduction <add>, %38, %cst_17 [1, 2] : vector<1x8x512xf32> to vector<1xf32>
      %40 = vector.shape_cast %39 : vector<1xf32> to vector<1x1x1xf32>
      %41 = vector.extract %40[0, 0, 0] : f32 from vector<1x1x1xf32>
      %42 = vector.broadcast %41 : f32 to vector<8x128xf32>
      %c0_18 = arith.constant 0 : index
      %c0_19 = arith.constant 0 : index
      %43 = vector.load %arg5[%c0_18, %c0_19] : memref<8x128xf32, #tpu.memory_space<vmem>>, vector<8x128xf32>
      tpu.vector_store %arg5[%c0_18, %c0_19], %42 {strides = array<i32>} : memref<8x128xf32, #tpu.memory_space<vmem>>, vector<8x128xf32>,
    } else {
    }
    return
  }
  func.func @transform_0(%arg0: i32, %arg1: i32) -> (i32, i32) {
    %c1_i32 = arith.constant 1 : i32
    %0 = arith.muli %arg0, %c1_i32 : i32
    %1 = arith.addi %0, %arg1 : i32
    %c0_i32 = arith.constant 0 : i32
    %c0_i32_0 = arith.constant 0 : i32
    return %1, %c0_i32 : i32, i32
  }
  func.func @transform_1(%arg0: i32, %arg1: i32) -> (i32, i32) {
    %c1_i32 = arith.constant 1 : i32
    %0 = arith.muli %arg0, %c1_i32 : i32
    %1 = arith.addi %0, %arg1 : i32
    %c0_i32 = arith.constant 0 : i32
    %c0_i32_0 = arith.constant 0 : i32
    return %1, %c0_i32 : i32, i32
  }
  func.func @transform_2(%arg0: i32, %arg1: i32) -> (i32, i32) {
    %c1_i32 = arith.constant 1 : i32
    %0 = arith.muli %arg0, %c1_i32 : i32
    %1 = arith.addi %0, %arg1 : i32
    %c0_i32 = arith.constant 0 : i32
    %c0_i32_0 = arith.constant 0 : i32
    return %1, %c0_i32 : i32, i32
  }
  func.func @transform_3(%arg0: i32, %arg1: i32) -> (i32, i32) {
    %c0_i32 = arith.constant 0 : i32
    %c0_i32_0 = arith.constant 0 : i32
    return %arg0, %c0_i32 : i32, i32
  }
}

</mosaic_0001>

<llo_original>
// kernel: tpu_custom_call.1
$region0: #{tpu_custom_call.1}
  #allocation0 [shape = 'u32[]', space=smem, size = 0x4, offset = 0x4, fixed_abs, tag = 'smem constant byte address 0x4 - core index']
  #allocation1 [shape = 'u32[144,128]{1,0:T(1,128)}', space=vmem, size = 0x12000, scoped, tag = 'internal scratch']
  #allocation2 [shape = 'f32[8,512]{1,0:T(8,128)}', space=vmem, size = 0x4000, scoped, tag = 'scratch operand']
  %s0 = inlined_call_operand.hbm [shape: f32[8,512], index: 0, kind: input, shape index: {}]
  %s1 = inlined_call_operand.hbm [shape: f32[8,512], index: 1, kind: input, shape index: {}]
  %s2 = inlined_call_operand.hbm [shape: f32[8,512], index: 2, kind: input, shape index: {}]
  %s3 = inlined_call_operand.hbm [shape: f32[8,128], index: 3, kind: output, shape index: {}]
  %s4 = sld [smem:[#allocation0]]
  $region42: #{tpu_custom_call.1} parent=0
    _
  %s6 = ssub.s32 1, %s4
  %s7 = scalar_select 0, %s6, %s4
  $region1: #{tpu_custom_call.1} parent=0
    #allocation3 [shape = 'u8[16384]{0}', space=vmem, size = 0x4000, scoped, tag = 'input window, operand 0, single buffered']
    #allocation4 [shape = 's32[1]{0}', space=sflag, size = 0x4, scoped, tag = 'scoped memory for tpu_custom_call.1']
    #allocation5 [shape = 's32[1]{0}', space=sflag, size = 0x4, scoped, tag = 'scoped memory for tpu_custom_call.1']
    #allocation6 [shape = 'u8[16384]{0}', space=vmem, size = 0x4000, scoped, tag = 'input window, operand 1, single buffered']
    #allocation7 [shape = 's32[1]{0}', space=sflag, size = 0x4, scoped, tag = 'scoped memory for tpu_custom_call.1']
    #allocation8 [shape = 'u8[16384]{0}', space=vmem, size = 0x4000, scoped, tag = 'input window, operand 2, single buffered']
    #allocation9 [shape = 'u8[4096]{0}', space=vmem, size = 0x1000, scoped, tag = 'output window, operand 0, single buffered']
    %8 = vsyncpa [#allocation4], 0
    %9 = vsyncpa [#allocation7], 0
    %10 = vsyncpa [#allocation5], 0
    // Predicated region
    $region2: #{tpu_custom_call.1} parent=1 // pred_check
      _
    $region3: #{tpu_custom_call.1} parent=1 // pred_check_branch
      %12 = sbr.rel (0) target = $region5
    $region4: #{tpu_custom_call.1} parent=1 // pred_region
      %s13 = sadd.s32 0, 0
      %s15 = ssub.s32 512, 512
      %16 = vsyncadd [#allocation4], %s15
      %s17 = smul.addr %s13, 4
      %s18 = smul.addr %s17, 128
      %s19 = scalar_lea.hbm %s0, %s18
      %s21 = sshll.u32 [#allocation3], 4
      %s22 = int_to_ptr.vmem [resolvable:$true] %s21
      %24 = dma.hbm_to_vmem [thread:$0]  %s19, 512, %s22, [#allocation4]
    $region5: #{tpu_custom_call.1} parent=1 // pred_fallthru
      _
    // Predicated region
    $region6: #{tpu_custom_call.1} parent=1 // pred_check
      _
    $region7: #{tpu_custom_call.1} parent=1 // pred_check_branch
      %26 = sbr.rel (0) target = $region9
    $region8: #{tpu_custom_call.1} parent=1 // pred_region
      %s27 = sadd.s32 0, 0
      %s29 = ssub.s32 512, 512
      %30 = vsyncadd [#allocation7], %s29
      %s31 = smul.addr %s27, 4
      %s32 = smul.addr %s31, 128
      %s33 = scalar_lea.hbm %s1, %s32
      %s35 = sshll.u32 [#allocation6], 4
      %s36 = int_to_ptr.vmem [resolvable:$true] %s35
      %38 = dma.hbm_to_vmem [thread:$0]  %s33, 512, %s36, [#allocation7]
    $region9: #{tpu_custom_call.1} parent=1 // pred_fallthru
      _
    // Predicated region
    $region10: #{tpu_custom_call.1} parent=1 // pred_check
      _
    $region11: #{tpu_custom_call.1} parent=1 // pred_check_branch
      %40 = sbr.rel (0) target = $region13
    $region12: #{tpu_custom_call.1} parent=1 // pred_region
      %s41 = sadd.s32 0, 0
      %s43 = ssub.s32 512, 512
      %44 = vsyncadd [#allocation7], %s43
      %s45 = smul.addr %s41, 4
      %s46 = smul.addr %s45, 128
      %s47 = scalar_lea.hbm %s2, %s46
      %s49 = sshll.u32 [#allocation8], 4
      %s50 = int_to_ptr.vmem [resolvable:$true] %s49
      %52 = dma.hbm_to_vmem [thread:$0]  %s47, 512, %s50, [#allocation7]
    $region13: #{tpu_custom_call.1} parent=1 // pred_fallthru
      _
    // Predicated region
    $region14: #{tpu_custom_call.1} parent=1 // pred_check
      _
    $region15: #{tpu_custom_call.1} parent=1 // pred_check_branch
      %54 = sbr.rel (0) target = $region17
    $region16: #{tpu_custom_call.1} parent=1 // pred_region
      %55 = dma.done [#allocation4], 512
    $region17: #{tpu_custom_call.1} parent=1 // pred_fallthru
      _
    // Predicated region
    $region18: #{tpu_custom_call.1} parent=1 // pred_check
      _
    $region19: #{tpu_custom_call.1} parent=1 // pred_check_branch
      %57 = sbr.rel (0) target = $region21
    $region20: #{tpu_custom_call.1} parent=1 // pred_region
      %58 = dma.done [#allocation7], 512
    $region21: #{tpu_custom_call.1} parent=1 // pred_fallthru
      _
    // Predicated region
    $region22: #{tpu_custom_call.1} parent=1 // pred_check
      _
    $region23: #{tpu_custom_call.1} parent=1 // pred_check_branch
      %60 = sbr.rel (0) target = $region25
    $region24: #{tpu_custom_call.1} parent=1 // pred_region
      %61 = dma.done [#allocation7], 512
    $region25: #{tpu_custom_call.1} parent=1 // pred_fallthru
      _
    %s62 = sadd.s32 0, 0
    %s63 = sadd.s32 0, 0
    %s64 = sadd.s32 0, 0
    %p65 = scmp.eq.s32.totalorder 0, 0
    // Predicated region
    $region26: #{tpu_custom_call.1} parent=1 // pred_check
      %p66 = pneg %p65
    $region27: #{tpu_custom_call.1} parent=1 // pred_check_branch
      %68 = sbr.rel (%p66) target = $region29
    $region28: #{tpu_custom_call.1} parent=1 // pred_region
      %69 = vst [vmem:[#allocation2] sm:$0xff] 0.0
      %70 = vst [vmem:[#allocation2 + $0x8] sm:$0xff] 0.0
      %71 = vst [vmem:[#allocation2 + $0x10] sm:$0xff] 0.0
      %72 = vst [vmem:[#allocation2 + $0x18] sm:$0xff] 0.0
    $region29: #{tpu_custom_call.1} parent=1 // pred_fallthru
      _
    %v73 = vld [vmem:[#allocation3] sm:$0xff]
    %v74 = vld [vmem:[#allocation3 + $0x8] sm:$0xff]
    %v75 = vld [vmem:[#allocation3 + $0x10] sm:$0xff]
    %v76 = vld [vmem:[#allocation3 + $0x18] sm:$0xff]
    %v77 = vld [vmem:[#allocation6] sm:$0xff]
    %v78 = vld [vmem:[#allocation6 + $0x8] sm:$0xff]
    %v79 = vld [vmem:[#allocation6 + $0x10] sm:$0xff]
    %v80 = vld [vmem:[#allocation6 + $0x18] sm:$0xff]
    %v81 = vld [vmem:[#allocation8] sm:$0xff]
    %v82 = vld [vmem:[#allocation8 + $0x8] sm:$0xff]
    %v83 = vld [vmem:[#allocation8 + $0x10] sm:$0xff]
    %v84 = vld [vmem:[#allocation8 + $0x18] sm:$0xff]
    %v85 = vsub.f32 %v81, %v73
    %v86 = vsub.f32 %v82, %v74
    %v87 = vsub.f32 %v83, %v75
    %v88 = vsub.f32 %v84, %v76
    %v89 = vmul.f32 %v85, %v85
    %v90 = vmul.f32 %v86, %v86
    %v91 = vmul.f32 %v87, %v87
    %v92 = vmul.f32 %v88, %v88
    %v93 = vsub.f32 0.0, %v77
    %v94 = vsub.f32 0.0, %v78
    %v95 = vsub.f32 0.0, %v79
    %v96 = vsub.f32 0.0, %v80
    %v97 = vmul.f32 %v93, 1.442695
    %v98 = vpow.pop %v97
    %v99 = vmul.f32 %v94, 1.442695
    %v100 = vpow.pop %v99
    %v101 = vmul.f32 %v95, 1.442695
    %v102 = vpow.pop %v101
    %v103 = vmul.f32 %v96, 1.442695
    %v104 = vpow.pop %v103
    %v105 = vmul.f32 %v89, %v98
    %v106 = vmul.f32 %v90, %v100
    %v107 = vmul.f32 %v91, %v102
    %v108 = vmul.f32 %v92, %v104
    %v109 = vadd.f32 %v105, %v77
    %v110 = vadd.f32 %v106, %v78
    %v111 = vadd.f32 %v107, %v79
    %v112 = vadd.f32 %v108, %v80
    %v113 = vadd.f32 %v109, 1.837877
    %v114 = vadd.f32 %v110, 1.837877
    %v115 = vadd.f32 %v111, 1.837877
    %v116 = vadd.f32 %v112, 1.837877
    %v117 = vmul.f32 %v113, 0.5
    %v118 = vmul.f32 %v114, 0.5
    %v119 = vmul.f32 %v115, 0.5
    %v120 = vmul.f32 %v116, 0.5
    %s121 = sadd.s32 0, 0
    %s122 = smul.u32 %s121, 8
    %v123 = vlaneseq
    %v124 = vshrl.u32 %v123, 7
    %v125 = vstv %s122
    %v126 = vadd.s32 %v124, %v125
    %v127 = vlaneseq
    %v128 = vand.u32 %v127, 127
    %v129 = vadd.s32 %v128, 128
    %v130 = vadd.s32 %v128, 256
    %v131 = vadd.s32 %v128, 384
    %v132 = vmul.u32 %v126, 512
    %v133 = vadd.s32 %v132, %v128
    %v134 = vadd.s32 %v132, %v129
    %v135 = vadd.s32 %v132, %v130
    %v136 = vadd.s32 %v132, %v131
    %vm137 = vcmp.lt.s32.totalorder %v133, 2048
    %vm138 = vcmp.lt.s32.totalorder %v134, 2048
    %vm139 = vcmp.lt.s32.totalorder %v135, 2048
    %vm140 = vcmp.lt.s32.totalorder %v136, 2048
    %v141 = vsel %vm137, %v117, 0.0
    %v142 = vsel %vm138, %v118, 0.0
    %v143 = vsel %vm139, %v119, 0.0
    %v144 = vsel %vm140, %v120, 0.0
    %v145 = vld [vmem:[#allocation2] sm:$0xff]
    %v146 = vld [vmem:[#allocation2 + $0x8] sm:$0xff]
    %v147 = vld [vmem:[#allocation2 + $0x10] sm:$0xff]
    %v148 = vld [vmem:[#allocation2 + $0x18] sm:$0xff]
    %v149 = vadd.f32 %v145, %v141
    %v150 = vadd.f32 %v146, %v142
    %v151 = vadd.f32 %v147, %v143
    %v152 = vadd.f32 %v148, %v144
    %153 = vst [vmem:[#allocation2] sm:$0xff] %v149
    %154 = vst [vmem:[#allocation2 + $0x8] sm:$0xff] %v150
    %155 = vst [vmem:[#allocation2 + $0x10] sm:$0xff] %v151
    %156 = vst [vmem:[#allocation2 + $0x18] sm:$0xff] %v152
    // Predicated region
    $region30: #{tpu_custom_call.1} parent=1 // pred_check
      %p157 = pneg %p65
    $region31: #{tpu_custom_call.1} parent=1 // pred_check_branch
      %159 = sbr.rel (%p157) target = $region33
    $region32: #{tpu_custom_call.1} parent=1 // pred_region
      %v160 = vld [vmem:[#allocation2] sm:$0xff]
      %v161 = vld [vmem:[#allocation2 + $0x8] sm:$0xff]
      %v162 = vld [vmem:[#allocation2 + $0x10] sm:$0xff]
      %v163 = vld [vmem:[#allocation2 + $0x18] sm:$0xff]
      %v164 = vadd.f32 %v160, %v161
      %v165 = vadd.f32 %v164, %v162
      %v166 = vadd.f32 %v165, %v163
      %167 = vadd.xlane.f32.xlu0 %v166
      %v168 = vpop.xlane.xlu0 %167
      %v169 = vrot.slane %v168, 4
      %v170 = vadd.f32 %v168, %v169
      %v171 = vrot.slane %v170, 2
      %v172 = vadd.f32 %v170, %v171
      %v173 = vrot.slane %v172, 1
      %v174 = vadd.f32 %v172, %v173
      %s175 = vtos %v174
      %v176 = vstv %s175
      %177 = vst [vmem:[#allocation9] sm:$0xff] %v176
    $region33: #{tpu_custom_call.1} parent=1 // pred_fallthru
      _
    // Predicated region
    $region34: #{tpu_custom_call.1} parent=1 // pred_check
      _
    $region35: #{tpu_custom_call.1} parent=1 // pred_check_branch
      %179 = sbr.rel (0) target = $region37
    $region36: #{tpu_custom_call.1} parent=1 // pred_region
      %s181 = ssub.s32 128, 128
      %182 = vsyncadd [#allocation5], %s181
      %s184 = sshll.u32 [#allocation9], 4
      %s185 = int_to_ptr.vmem [resolvable:$true] %s184
      %187 = dma.vmem_to_hbm [thread:$0]  %s185, 128, %s3, [#allocation5]
    $region37: #{tpu_custom_call.1} parent=1 // pred_fallthru
      _
    // Predicated region
    $region38: #{tpu_custom_call.1} parent=1 // pred_check
      _
    $region39: #{tpu_custom_call.1} parent=1 // pred_check_branch
      %189 = sbr.rel (0) target = $region41
    $region40: #{tpu_custom_call.1} parent=1 // pred_region
      %190 = dma.done [#allocation5], 128
    $region41: #{tpu_custom_call.1} parent=1 // pred_fallthru
      _
    %191 = vsyncpa [#allocation4], 1
    %192 = vsyncpa [#allocation7], 1
    %193 = vsyncpa [#allocation5], 1

</llo_original>
